<compile_context>
chip_gen: v7x
topology: tpu7x:2x2x1
jax: 0.10.0
libtpu: 0.0.40
codegen_flags: <defaults>
</compile_context>

<pallas_src>
import functools
import math

import jax
import jax.numpy as jnp
from jax.experimental import pallas as pl
from jax.experimental.pallas import tpu as pltpu


def _attention_kernel(B, Lq, Lk, D, q_ref, kv_ref, wqT_ref, wkvT_ref, wcT_ref,
                      o_ref):
    # Single grid step; batch folded into the matmul M dimension.
    #   q_ref   : (B*Lq, D)        kv_ref  : (B*Lk, D)
    #   wqT_ref : (D, D)   [(in, out), scale folded in]
    #   wkvT_ref: (D, 2D)  [(in, out)]
    #   wcT_ref : (D, Dpad)[(in, out), output lanes padded to >=128]
    #   o_ref   : (B*Lq, Dpad)
    cdt = wqT_ref.dtype                      # MXU operand dtype (f32 or bf16)

    # Q projection (softmax scale already folded into the weight on host).
    q = jnp.dot(q_ref[...].astype(cdt), wqT_ref[...],
                preferred_element_type=jnp.float32)           # (B*Lq, D) f32

    # Fused K/V projection, then lane split (== chunk(2, dim=-1)).
    kvp = jnp.dot(kv_ref[...].astype(cdt), wkvT_ref[...],
                  preferred_element_type=jnp.float32)         # (B*Lk, 2D) f32
    k = kvp[:, :D]
    v = kvp[:, D:]

    # Per-batch scores: contract the last (lane) dims of q and k directly.
    qb = q.reshape(B, Lq, D)
    kb = k.reshape(B, Lk, D)
    vb = v.reshape(B, Lk, D)
    scores = jnp.einsum("bqd,bkd->bqk", qb.astype(cdt), kb.astype(cdt),
                        preferred_element_type=jnp.float32)   # (B, Lq, Lk)

    # Max-stabilized softmax; normalization via approx reciprocal (EUP).
    m = jnp.max(scores, axis=-1, keepdims=True)
    p = jnp.exp(scores - m)
    l = jnp.sum(p, axis=-1, keepdims=True)
    attn = jnp.einsum("bqk,bkd->bqd", p.astype(cdt), vb.astype(cdt),
                      preferred_element_type=jnp.float32)     # (B, Lq, D)
    attn = attn * pl.reciprocal(l, approx=True)

    # Output ("concat") projection; padded weight makes the store lane-dense.
    out = jnp.dot(attn.reshape(B * Lq, D).astype(cdt), wcT_ref[...],
                  preferred_element_type=jnp.float32)         # (B*Lq, Dpad)
    o_ref[...] = out.astype(o_ref.dtype)


def prepare_weights(params, dim, nhead, *, matmul_dtype=jnp.float32):
    """One-time weight prep, hoisted out of the per-call path.

    Transpose to (in, out) layout, fold 1/sqrt(head_dim) into Wq^T, zero-pad
    Wc^T's output dim to a lane-dense multiple of 128, optionally down-cast
    MXU operands (bf16 recommended on v5e/v6e/v7x at real sizes).
    """
    head_dim = dim // nhead
    scale = 1.0 / math.sqrt(head_dim)
    d_pad = max(128, pl.cdiv(dim, 128) * 128)
    wqT = (params["wq"].T * scale).astype(matmul_dtype)       # (D, D)
    wkvT = params["wkv"].T.astype(matmul_dtype)               # (D, 2D)
    wcT = params["wc"].T.astype(matmul_dtype)                 # (D, D)
    wcT_pad = jnp.pad(wcT, ((0, 0), (0, d_pad - dim)))        # (D, d_pad)
    return {"wqT": wqT, "wkvT": wkvT, "wcT_pad": wcT_pad, "d_pad": d_pad}


def attention_forward(q, kv, prepped, nhead):
    B, Lq, D = q.shape
    Bk, Lk, Dk = kv.shape
    assert Bk == B and Dk == D
    assert D % nhead == 0
    # See module-level note: PyTorch forward only runs when head_dim == D.
    assert D // nhead == D, \
        "gtrxl.Attention forward is only shape-consistent for nhead == 1"

    d_pad = prepped["d_pad"]
    # Fold batch into the matmul M dim (free, contiguous reshape in XLA).
    q2d = q.reshape(B * Lq, D)
    kv2d = kv.reshape(B * Lk, D)

    kernel = functools.partial(_attention_kernel, B, Lq, Lk, D)

    out_pad = pl.pallas_call(
        kernel,
        out_shape=jax.ShapeDtypeStruct((B * Lq, d_pad), q.dtype),
        grid=(1,),  # single step: everything fits VMEM at these sizes
        in_specs=[
            pl.BlockSpec((B * Lq, D), lambda i: (0, 0)),
            pl.BlockSpec((B * Lk, D), lambda i: (0, 0)),
            pl.BlockSpec((D, D), lambda i: (0, 0)),
            pl.BlockSpec((D, 2 * D), lambda i: (0, 0)),
            pl.BlockSpec((D, d_pad), lambda i: (0, 0)),
        ],
        out_specs=pl.BlockSpec((B * Lq, d_pad), lambda i: (0, 0)),
        compiler_params=pltpu.CompilerParams(
            dimension_semantics=("arbitrary",),
        ),
    )(q2d, kv2d, prepped["wqT"], prepped["wkvT"], prepped["wcT_pad"])

    # Strip lane padding; 'b h l d -> b l (h d)' with h == 1 is the identity.
    return out_pad[:, :D].reshape(B, Lq, D)


def attention_reference(q, kv, params, nhead):
    """Pure-JAX reference mirroring the PyTorch forward (mask=None, nhead=1)."""
    D = q.shape[-1]
    head_dim = D // nhead
    wq, wkv, wc = params["wq"], params["wkv"], params["wc"]
    qp = q @ wq.T
    kvp = kv @ wkv.T
    k, v = kvp[..., :D], kvp[..., D:]
    scores = jnp.einsum("bld,bmd->blm", qp, k) / math.sqrt(head_dim)
    attn = jax.nn.softmax(scores, axis=-1)
    out = jnp.einsum("blm,bmd->bld", attn, v)
    return out @ wc.T


def init_params(key, dim):
    # Deterministic nn.Linear-style init: U(-1/sqrt(fan_in), 1/sqrt(fan_in)).
    k1, k2, k3 = jax.random.split(key, 3)
    bound = 1.0 / math.sqrt(dim)
    return {
        "wq": jax.random.uniform(k1, (dim, dim), jnp.float32, -bound, bound),
        "wkv": jax.random.uniform(k2, (2 * dim, dim), jnp.float32, -bound, bound),
        "wc": jax.random.uniform(k3, (dim, dim), jnp.float32, -bound, bound),
    }


if __name__ == "__main__":
    key = jax.random.PRNGKey(0)
    kp, kq, kkv = jax.random.split(key, 3)

    B, Lq, Lkv, dim, nhead = 2, 8, 8, 32, 1
    params = init_params(kp, dim)
    q_in = jax.random.normal(kq, (B, Lq, dim), jnp.float32)
    kv_in = jax.random.normal(kkv, (B, Lkv, dim), jnp.float32)

    # Weight prep (transpose / scale-fold / pad) done once, not per call.
    prepped = prepare_weights(params, dim, nhead)

    out = attention_forward(q_in, kv_in, prepped, nhead)
    out = jax.block_until_ready(out)

    ref = attention_reference(q_in, kv_in, params, nhead)
    assert out.shape == (B, Lq, dim)
    # Tolerance loosened slightly vs exact f32 because of the approx
    # reciprocal in the softmax normalization and the scale folded into Wq.
    assert jnp.allclose(out, ref, atol=2e-3, rtol=2e-3), "mismatch vs reference"

    print("KERNEL_OK")
</pallas_src>

<mosaic_0001>
module attributes {stable_mosaic.version = 11 : i64} {
  func.func @_attention_kernel(%arg0: i32, %arg1: memref<16x32xf32, #tpu.memory_space<vmem>>, %arg2: memref<16x32xf32, #tpu.memory_space<vmem>>, %arg3: memref<32x32xf32, #tpu.memory_space<vmem>>, %arg4: memref<32x64xf32, #tpu.memory_space<vmem>>, %arg5: memref<32x128xf32, #tpu.memory_space<vmem>>, %arg6: memref<16x128xf32, #tpu.memory_space<vmem>>) attributes {dimension_semantics = [#tpu.dimension_semantics<arbitrary>], iteration_bounds = array<i64: 1>, scalar_prefetch = 0 : i64, scratch_operands = 0 : i64, tpu.core_type = #tpu.core_type<tc>, window_params = [{pipeline_mode = #tpu.pipeline_mode<synchronous>, transform_indices = @transform_0, window_bounds = array<i64: 16, 32>}, {pipeline_mode = #tpu.pipeline_mode<synchronous>, transform_indices = @transform_1, window_bounds = array<i64: 16, 32>}, {pipeline_mode = #tpu.pipeline_mode<synchronous>, transform_indices = @transform_2, window_bounds = array<i64: 32, 32>}, {pipeline_mode = #tpu.pipeline_mode<synchronous>, transform_indices = @transform_3, window_bounds = array<i64: 32, 64>}, {pipeline_mode = #tpu.pipeline_mode<synchronous>, transform_indices = @transform_4, window_bounds = array<i64: 32, 128>}, {pipeline_mode = #tpu.pipeline_mode<synchronous>, transform_indices = @transform_5, window_bounds = array<i64: 16, 128>}]} {
    %c0 = arith.constant 0 : index
    %c0_0 = arith.constant 0 : index
    %0 = vector.load %arg1[%c0, %c0_0] : memref<16x32xf32, #tpu.memory_space<vmem>>, vector<16x32xf32>
    %c0_1 = arith.constant 0 : index
    %c0_2 = arith.constant 0 : index
    %1 = vector.load %arg3[%c0_1, %c0_2] : memref<32x32xf32, #tpu.memory_space<vmem>>, vector<32x32xf32>
    %cst = arith.constant dense<0.000000e+00> : vector<16x32xf32>
    %2 = tpu.matmul %0, %1, %cst {dimension_numbers = #tpu.dot_dimension_numbers<[1], [0], [0], [1], [0, 0, 1, 1], [], []>} : vector<16x32xf32>, vector<32x32xf32>, vector<16x32xf32> -> vector<16x32xf32>
    %c0_3 = arith.constant 0 : index
    %c0_4 = arith.constant 0 : index
    %3 = vector.load %arg2[%c0_3, %c0_4] : memref<16x32xf32, #tpu.memory_space<vmem>>, vector<16x32xf32>
    %c0_5 = arith.constant 0 : index
    %c0_6 = arith.constant 0 : index
    %4 = vector.load %arg4[%c0_5, %c0_6] : memref<32x64xf32, #tpu.memory_space<vmem>>, vector<32x64xf32>
    %cst_7 = arith.constant dense<0.000000e+00> : vector<16x64xf32>
    %5 = tpu.matmul %3, %4, %cst_7 {dimension_numbers = #tpu.dot_dimension_numbers<[1], [0], [0], [1], [0, 0, 1, 1], [], []>} : vector<16x32xf32>, vector<32x64xf32>, vector<16x64xf32> -> vector<16x64xf32>
    %6 = vector.extract_strided_slice %5 {offsets = [0, 0], sizes = [16, 32], strides = [1, 1]} : vector<16x64xf32> to vector<16x32xf32>
    %7 = vector.extract_strided_slice %5 {offsets = [0, 32], sizes = [16, 32], strides = [1, 1]} : vector<16x64xf32> to vector<16x32xf32>
    %8 = vector.shape_cast %2 : vector<16x32xf32> to vector<2x8x32xf32>
    %9 = vector.shape_cast %6 : vector<16x32xf32> to vector<2x8x32xf32>
    %10 = vector.shape_cast %7 : vector<16x32xf32> to vector<2x8x32xf32>
    "tpu.trace_start"() <{level = 10 : i32, message = "bqd,bkd->bqk"}> : () -> ()
    %cst_8 = arith.constant dense<0.000000e+00> : vector<2x8x8xf32>
    %11 = tpu.matmul %8, %9, %cst_8 {dimension_numbers = #tpu.dot_dimension_numbers<[2], [2], [1], [1], [0, 0, 0, 1, 1, 1], [0], [0]>} : vector<2x8x32xf32>, vector<2x8x32xf32>, vector<2x8x8xf32> -> vector<2x8x8xf32>
    "tpu.trace_stop"() : () -> ()
    %cst_9 = arith.constant dense<0xFF800000> : vector<2x8xf32>
    %12 = vector.multi_reduction <maximumf>, %11, %cst_9 [2] : vector<2x8x8xf32> to vector<2x8xf32>
    %13 = vector.shape_cast %12 : vector<2x8xf32> to vector<2x8x1xf32>
    %14 = vector.broadcast %13 : vector<2x8x1xf32> to vector<2x8x8xf32>
    %15 = arith.subf %11, %14 : vector<2x8x8xf32>
    %16 = math.exp %15 : vector<2x8x8xf32>
    %cst_10 = arith.constant dense<0.000000e+00> : vector<2x8xf32>
    %17 = vector.multi_reduction <add>, %16, %cst_10 [2] : vector<2x8x8xf32> to vector<2x8xf32>
    %18 = vector.shape_cast %17 : vector<2x8xf32> to vector<2x8x1xf32>
    "tpu.trace_start"() <{level = 10 : i32, message = "bqk,bkd->bqd"}> : () -> ()
    %cst_11 = arith.constant dense<0.000000e+00> : vector<2x8x32xf32>
    %19 = tpu.matmul %16, %10, %cst_11 {dimension_numbers = #tpu.dot_dimension_numbers<[2], [1], [1], [2], [0, 0, 0, 1, 1, 2], [0], [0]>} : vector<2x8x8xf32>, vector<2x8x32xf32>, vector<2x8x32xf32> -> vector<2x8x32xf32>
    "tpu.trace_stop"() : () -> ()
    %20 = tpu.reciprocal %18 {approx = true} : vector<2x8x1xf32> -> vector<2x8x1xf32>
    %21 = vector.broadcast %20 : vector<2x8x1xf32> to vector<2x8x32xf32>
    %22 = arith.mulf %19, %21 : vector<2x8x32xf32>
    %23 = vector.shape_cast %22 : vector<2x8x32xf32> to vector<16x32xf32>
    %c0_12 = arith.constant 0 : index
    %c0_13 = arith.constant 0 : index
    %24 = vector.load %arg5[%c0_12, %c0_13] : memref<32x128xf32, #tpu.memory_space<vmem>>, vector<32x128xf32>
    %cst_14 = arith.constant dense<0.000000e+00> : vector<16x128xf32>
    %25 = tpu.matmul %23, %24, %cst_14 {dimension_numbers = #tpu.dot_dimension_numbers<[1], [0], [0], [1], [0, 0, 1, 1], [], []>} : vector<16x32xf32>, vector<32x128xf32>, vector<16x128xf32> -> vector<16x128xf32>
    %c0_15 = arith.constant 0 : index
    %c0_16 = arith.constant 0 : index
    %26 = vector.load %arg6[%c0_15, %c0_16] : memref<16x128xf32, #tpu.memory_space<vmem>>, vector<16x128xf32>
    tpu.vector_store %arg6[%c0_15, %c0_16], %25 {strides = array<i32>} : memref<16x128xf32, #tpu.memory_space<vmem>>, vector<16x128xf32>,
    return
  }
  func.func @transform_0(%arg0: i32) -> (i32, i32) {
    %c0_i32 = arith.constant 0 : i32
    %c0_i32_0 = arith.constant 0 : i32
    %c0_i32_1 = arith.constant 0 : i32
    return %c0_i32, %c0_i32_0 : i32, i32
  }
  func.func @transform_1(%arg0: i32) -> (i32, i32) {
    %c0_i32 = arith.constant 0 : i32
    %c0_i32_0 = arith.constant 0 : i32
    %c0_i32_1 = arith.constant 0 : i32
    return %c0_i32, %c0_i32_0 : i32, i32
  }
  func.func @transform_2(%arg0: i32) -> (i32, i32) {
    %c0_i32 = arith.constant 0 : i32
    %c0_i32_0 = arith.constant 0 : i32
    %c0_i32_1 = arith.constant 0 : i32
    return %c0_i32, %c0_i32_0 : i32, i32
  }
  func.func @transform_3(%arg0: i32) -> (i32, i32) {
    %c0_i32 = arith.constant 0 : i32
    %c0_i32_0 = arith.constant 0 : i32
    %c0_i32_1 = arith.constant 0 : i32
    return %c0_i32, %c0_i32_0 : i32, i32
  }
  func.func @transform_4(%arg0: i32) -> (i32, i32) {
    %c0_i32 = arith.constant 0 : i32
    %c0_i32_0 = arith.constant 0 : i32
    %c0_i32_1 = arith.constant 0 : i32
    return %c0_i32, %c0_i32_0 : i32, i32
  }
  func.func @transform_5(%arg0: i32) -> (i32, i32) {
    %c0_i32 = arith.constant 0 : i32
    %c0_i32_0 = arith.constant 0 : i32
    %c0_i32_1 = arith.constant 0 : i32
    return %c0_i32, %c0_i32_0 : i32, i32
  }
}

</mosaic_0001>

<llo_original>
// kernel: tpu_custom_call.1
$region0: #{tpu_custom_call.1}
  #allocation0 [shape = 'u32[]', space=smem, size = 0x4, offset = 0x4, fixed_abs, tag = 'smem constant byte address 0x4 - core index']
  #allocation1 [shape = 'u32[144,128]{1,0:T(1,128)}', space=vmem, size = 0x12000, scoped, tag = 'internal scratch']
  %s0 = inlined_call_operand.hbm [shape: f32[16,32], index: 0, kind: input, shape index: {}]
  %s1 = inlined_call_operand.hbm [shape: f32[16,32], index: 1, kind: input, shape index: {}]
  %s2 = inlined_call_operand.hbm [shape: f32[32,32], index: 2, kind: input, shape index: {}]
  %s3 = inlined_call_operand.hbm [shape: f32[32,64], index: 3, kind: input, shape index: {}]
  %s4 = inlined_call_operand.hbm [shape: f32[32,128], index: 4, kind: input, shape index: {}]
  %s5 = inlined_call_operand.hbm [shape: f32[16,128], index: 5, kind: output, shape index: {}]
  %s6 = sld [smem:[#allocation0]]
  $region50: #{tpu_custom_call.1} parent=0
    _
  %s8 = ssub.s32 1, %s6
  %s9 = scalar_select 0, %s8, %s6
  $region1: #{tpu_custom_call.1} parent=0
    #allocation2 [shape = 'u8[8192]{0}', space=vmem, size = 0x2000, scoped, tag = 'input window, operand 0, single buffered']
    #allocation3 [shape = 's32[1]{0}', space=sflag, size = 0x4, scoped, tag = 'scoped memory for tpu_custom_call.1']
    #allocation4 [shape = 's32[1]{0}', space=sflag, size = 0x4, scoped, tag = 'scoped memory for tpu_custom_call.1']
    #allocation5 [shape = 'u8[8192]{0}', space=vmem, size = 0x2000, scoped, tag = 'input window, operand 1, single buffered']
    #allocation6 [shape = 's32[1]{0}', space=sflag, size = 0x4, scoped, tag = 'scoped memory for tpu_custom_call.1']
    #allocation7 [shape = 'u8[16384]{0}', space=vmem, size = 0x4000, scoped, tag = 'input window, operand 2, single buffered']
    #allocation8 [shape = 'u8[16384]{0}', space=vmem, size = 0x4000, scoped, tag = 'input window, operand 3, single buffered']
    #allocation9 [shape = 's32[1]{0}', space=sflag, size = 0x4, scoped, tag = 'scoped memory for tpu_custom_call.1']
    #allocation10 [shape = 'u8[16384]{0}', space=vmem, size = 0x4000, scoped, tag = 'input window, operand 4, single buffered']
    #allocation11 [shape = 'u8[8192]{0}', space=vmem, size = 0x2000, scoped, tag = 'output window, operand 0, single buffered']
    %10 = vsyncpa [#allocation3], 0
    %11 = vsyncpa [#allocation6], 0
    %12 = vsyncpa [#allocation9], 0
    %13 = vsyncpa [#allocation4], 0
    // Predicated region
    $region2: #{tpu_custom_call.1} parent=1 // pred_check
      _
    $region3: #{tpu_custom_call.1} parent=1 // pred_check_branch
      %15 = sbr.rel (0) target = $region5
    $region4: #{tpu_custom_call.1} parent=1 // pred_region
      %s17 = ssub.s32 256, 256
      %18 = vsyncadd [#allocation3], %s17
      %s19 = sshll.u32 [#allocation2], 4
      %s20 = int_to_ptr.vmem [resolvable:$true] %s19
      %25 = dma.hbm_to_vmem [thread:$0]  %s0, 256, %s20, [#allocation3], 128, 128, 8
    $region5: #{tpu_custom_call.1} parent=1 // pred_fallthru
      _
    // Predicated region
    $region6: #{tpu_custom_call.1} parent=1 // pred_check
      _
    $region7: #{tpu_custom_call.1} parent=1 // pred_check_branch
      %27 = sbr.rel (0) target = $region9
    $region8: #{tpu_custom_call.1} parent=1 // pred_region
      %s29 = ssub.s32 256, 256
      %30 = vsyncadd [#allocation6], %s29
      %s31 = sshll.u32 [#allocation5], 4
      %s32 = int_to_ptr.vmem [resolvable:$true] %s31
      %37 = dma.hbm_to_vmem [thread:$0]  %s1, 256, %s32, [#allocation6], 128, 128, 8
    $region9: #{tpu_custom_call.1} parent=1 // pred_fallthru
      _
    // Predicated region
    $region10: #{tpu_custom_call.1} parent=1 // pred_check
      _
    $region11: #{tpu_custom_call.1} parent=1 // pred_check_branch
      %39 = sbr.rel (0) target = $region13
    $region12: #{tpu_custom_call.1} parent=1 // pred_region
      %s41 = ssub.s32 512, 512
      %42 = vsyncadd [#allocation6], %s41
      %s43 = sshll.u32 [#allocation7], 4
      %s44 = int_to_ptr.vmem [resolvable:$true] %s43
      %49 = dma.hbm_to_vmem [thread:$0]  %s2, 512, %s44, [#allocation6], 128, 128, 8
    $region13: #{tpu_custom_call.1} parent=1 // pred_fallthru
      _
    // Predicated region
    $region14: #{tpu_custom_call.1} parent=1 // pred_check
      _
    $region15: #{tpu_custom_call.1} parent=1 // pred_check_branch
      %51 = sbr.rel (0) target = $region17
    $region16: #{tpu_custom_call.1} parent=1 // pred_region
      %s53 = ssub.s32 512, 512
      %54 = vsyncadd [#allocation9], %s53
      %s55 = sshll.u32 [#allocation8], 4
      %s56 = int_to_ptr.vmem [resolvable:$true] %s55
      %61 = dma.hbm_to_vmem [thread:$0]  %s3, 512, %s56, [#allocation9], 128, 128, 8
    $region17: #{tpu_custom_call.1} parent=1 // pred_fallthru
      _
    // Predicated region
    $region18: #{tpu_custom_call.1} parent=1 // pred_check
      _
    $region19: #{tpu_custom_call.1} parent=1 // pred_check_branch
      %63 = sbr.rel (0) target = $region21
    $region20: #{tpu_custom_call.1} parent=1 // pred_region
      %s65 = ssub.s32 512, 512
      %66 = vsyncadd [#allocation9], %s65
      %s67 = sshll.u32 [#allocation10], 4
      %s68 = int_to_ptr.vmem [resolvable:$true] %s67
      %73 = dma.hbm_to_vmem [thread:$0]  %s4, 512, %s68, [#allocation9], 128, 128, 8
    $region21: #{tpu_custom_call.1} parent=1 // pred_fallthru
      _
    // Predicated region
    $region22: #{tpu_custom_call.1} parent=1 // pred_check
      _
    $region23: #{tpu_custom_call.1} parent=1 // pred_check_branch
      %75 = sbr.rel (0) target = $region25
    $region24: #{tpu_custom_call.1} parent=1 // pred_region
      %76 = dma.done [#allocation3], 256
    $region25: #{tpu_custom_call.1} parent=1 // pred_fallthru
      _
    // Predicated region
    $region26: #{tpu_custom_call.1} parent=1 // pred_check
      _
    $region27: #{tpu_custom_call.1} parent=1 // pred_check_branch
      %78 = sbr.rel (0) target = $region29
    $region28: #{tpu_custom_call.1} parent=1 // pred_region
      %79 = dma.done [#allocation6], 256
    $region29: #{tpu_custom_call.1} parent=1 // pred_fallthru
      _
    // Predicated region
    $region30: #{tpu_custom_call.1} parent=1 // pred_check
      _
    $region31: #{tpu_custom_call.1} parent=1 // pred_check_branch
      %81 = sbr.rel (0) target = $region33
    $region32: #{tpu_custom_call.1} parent=1 // pred_region
      %82 = dma.done [#allocation6], 512
    $region33: #{tpu_custom_call.1} parent=1 // pred_fallthru
      _
    // Predicated region
    $region34: #{tpu_custom_call.1} parent=1 // pred_check
      _
    $region35: #{tpu_custom_call.1} parent=1 // pred_check_branch
      %84 = sbr.rel (0) target = $region37
    $region36: #{tpu_custom_call.1} parent=1 // pred_region
      %85 = dma.done [#allocation9], 512
    $region37: #{tpu_custom_call.1} parent=1 // pred_fallthru
      _
    // Predicated region
    $region38: #{tpu_custom_call.1} parent=1 // pred_check
      _
    $region39: #{tpu_custom_call.1} parent=1 // pred_check_branch
      %87 = sbr.rel (0) target = $region41
    $region40: #{tpu_custom_call.1} parent=1 // pred_region
      %88 = dma.done [#allocation9], 512
    $region41: #{tpu_custom_call.1} parent=1 // pred_fallthru
      _
    %v89 = vld [vmem:[#allocation2] sm:$0xff]
    %v90 = vld [vmem:[#allocation2 + $0x8] sm:$0xff]
    %v91 = vld [vmem:[#allocation7] sm:$0xff]
    %v92 = vld [vmem:[#allocation7 + $0x8] sm:$0xff]
    %v93 = vld [vmem:[#allocation7 + $0x10] sm:$0xff]
    %v94 = vld [vmem:[#allocation7 + $0x18] sm:$0xff]
    %vm95 = vcmask 261120
    %v97 = vsel %vm95, %v89, 0
    %v100 = vsel %vm95, %v90, 0
    %102 = vmatprep.subr.mxu0 0.0
    %103 = vmatpush1.msra.mxu0 %v91
    %104 = vmatprep.subr.mxu0 0.0
    %105 = vmatpush1.msra.mxu0 %v92
    %106 = vmatprep.subr.mxu0 0.0
    %107 = vmatpush1.msra.mxu0 %v93
    %108 = vmatprep.subr.mxu0 0.0
    %109 = vmatpush1.msra.mxu0 %v94
    %110 = vmatprep.subr.mxu0 0.0
    %111 = vmatpush1.msra.mxu0 0.0
    %112 = vmatprep.subr.mxu0 0.0
    %113 = vmatpush1.msra.mxu0 0.0
    %114 = vmatprep.subr.mxu0 0.0
    %115 = vmatpush1.msra.mxu0 0.0
    %116 = vmatprep.subr.mxu0 0.0
    %117 = vmatpush1.msra.mxu0 0.0
    %118 = vmatprep.subr.mxu0 0.0
    %119 = vmatpush1.msra.mxu0 0.0
    %120 = vmatprep.subr.mxu0 0.0
    %121 = vmatpush1.msra.mxu0 0.0
    %122 = vmatprep.subr.mxu0 0.0
    %123 = vmatpush1.msra.mxu0 0.0
    %124 = vmatprep.subr.mxu0 0.0
    %125 = vmatpush1.msra.mxu0 0.0
    %126 = vmatprep.subr.mxu0 0.0
    %127 = vmatpush1.msra.mxu0 0.0
    %128 = vmatprep.subr.mxu0 0.0
    %129 = vmatpush1.msra.mxu0 0.0
    %130 = vmatprep.subr.mxu0 0.0
    %131 = vmatpush1.msra.mxu0 0.0
    %132 = vmatprep.subr.mxu0 0.0
    %133 = vmatpush1.msra.mxu0 0.0
    %134 = vmatprep.subr.mxu0 0.0
    %135 = vmatpush1.msra.mxu0 0.0
    %136 = vmatprep.subr.mxu0 0.0
    %137 = vmatpush1.msra.mxu0 0.0
    %138 = vmatprep.subr.mxu0 0.0
    %139 = vmatpush1.msra.mxu0 0.0
    %140 = vmatprep.subr.mxu0 0.0
    %141 = vmatpush1.msra.mxu0 0.0
    %142 = vmatprep.subr.mxu0 0.0
    %143 = vmatpush1.msra.mxu0 0.0
    %144 = vmatprep.subr.mxu0 0.0
    %145 = vmatpush1.msra.mxu0 0.0
    %146 = vmatprep.subr.mxu0 0.0
    %147 = vmatpush1.msra.mxu0 0.0
    %148 = vmatprep.subr.mxu0 0.0
    %149 = vmatpush1.msra.mxu0 0.0
    %150 = vmatprep.subr.mxu0 0.0
    %151 = vmatpush1.msra.mxu0 0.0
    %152 = vmatprep.subr.mxu0 0.0
    %153 = vmatpush1.msra.mxu0 0.0
    %154 = vmatprep.subr.mxu0 0.0
    %155 = vmatpush1.msra.mxu0 0.0
    %156 = vmatprep.subr.mxu0 0.0
    %157 = vmatpush1.msra.mxu0 0.0
    %158 = vmatprep.subr.mxu0 0.0
    %159 = vmatpush1.msra.mxu0 0.0
    %160 = vmatprep.subr.mxu0 0.0
    %161 = vmatpush1.msra.mxu0 0.0
    %162 = vmatprep.subr.mxu0 0.0
    %163 = vmatpush1.msra.mxu0 0.0
    %164 = vmatprep.subr.mxu0 0.0
    %165 = vmatpush1.msra.mxu0 0.0
    %166 = vmatprep.mubr.f32.mxu0 0.0
    %167 = vmatmul.mubr.f32.gmra.mrb[0].mxu0 %v97
    %v168 = vpop.f32.mrb[0].mxu0
    %v169 = vadd.f32 0.0, %v168
    %v170 = vpop.f32.mrb[0].mxu0
    %171 = vmatprep.mubr.f32.mxu0 0.0
    %172 = vmatmul.mubr.f32.gmra.mrb[0].mxu0 %v100
    %v173 = vpop.f32.mrb[0].mxu0
    %v174 = vadd.f32 0.0, %v173
    %v175 = vpop.f32.mrb[0].mxu0
    %176 = vdwg.mxu0
    %v177 = vld [vmem:[#allocation5] sm:$0xff]
    %v178 = vld [vmem:[#allocation5 + $0x8] sm:$0xff]
    %v179 = vld [vmem:[#allocation8] sm:$0xff]
    %v180 = vld [vmem:[#allocation8 + $0x8] sm:$0xff]
    %v181 = vld [vmem:[#allocation8 + $0x10] sm:$0xff]
    %v182 = vld [vmem:[#allocation8 + $0x18] sm:$0xff]
    %v184 = vsel %vm95, %v177, 0
    %v187 = vsel %vm95, %v178, 0
    %189 = vmatprep.subr.mxu0 0.0
    %190 = vmatpush1.msra.mxu0 %v179
    %191 = vmatprep.subr.mxu0 0.0
    %192 = vmatpush1.msra.mxu0 %v180
    %193 = vmatprep.subr.mxu0 0.0
    %194 = vmatpush1.msra.mxu0 %v181
    %195 = vmatprep.subr.mxu0 0.0
    %196 = vmatpush1.msra.mxu0 %v182
    %197 = vmatprep.subr.mxu0 0.0
    %198 = vmatpush1.msra.mxu0 0.0
    %199 = vmatprep.subr.mxu0 0.0
    %200 = vmatpush1.msra.mxu0 0.0
    %201 = vmatprep.subr.mxu0 0.0
    %202 = vmatpush1.msra.mxu0 0.0
    %203 = vmatprep.subr.mxu0 0.0
    %204 = vmatpush1.msra.mxu0 0.0
    %205 = vmatprep.subr.mxu0 0.0
    %206 = vmatpush1.msra.mxu0 0.0
    %207 = vmatprep.subr.mxu0 0.0
    %208 = vmatpush1.msra.mxu0 0.0
    %209 = vmatprep.subr.mxu0 0.0
    %210 = vmatpush1.msra.mxu0 0.0
    %211 = vmatprep.subr.mxu0 0.0
    %212 = vmatpush1.msra.mxu0 0.0
    %213 = vmatprep.subr.mxu0 0.0
    %214 = vmatpush1.msra.mxu0 0.0
    %215 = vmatprep.subr.mxu0 0.0
    %216 = vmatpush1.msra.mxu0 0.0
    %217 = vmatprep.subr.mxu0 0.0
    %218 = vmatpush1.msra.mxu0 0.0
    %219 = vmatprep.subr.mxu0 0.0
    %220 = vmatpush1.msra.mxu0 0.0
    %221 = vmatprep.subr.mxu0 0.0
    %222 = vmatpush1.msra.mxu0 0.0
    %223 = vmatprep.subr.mxu0 0.0
    %224 = vmatpush1.msra.mxu0 0.0
    %225 = vmatprep.subr.mxu0 0.0
    %226 = vmatpush1.msra.mxu0 0.0
    %227 = vmatprep.subr.mxu0 0.0
    %228 = vmatpush1.msra.mxu0 0.0
    %229 = vmatprep.subr.mxu0 0.0
    %230 = vmatpush1.msra.mxu0 0.0
    %231 = vmatprep.subr.mxu0 0.0
    %232 = vmatpush1.msra.mxu0 0.0
    %233 = vmatprep.subr.mxu0 0.0
    %234 = vmatpush1.msra.mxu0 0.0
    %235 = vmatprep.subr.mxu0 0.0
    %236 = vmatpush1.msra.mxu0 0.0
    %237 = vmatprep.subr.mxu0 0.0
    %238 = vmatpush1.msra.mxu0 0.0
    %239 = vmatprep.subr.mxu0 0.0
    %240 = vmatpush1.msra.mxu0 0.0
    %241 = vmatprep.subr.mxu0 0.0
    %242 = vmatpush1.msra.mxu0 0.0
    %243 = vmatprep.subr.mxu0 0.0
    %244 = vmatpush1.msra.mxu0 0.0
    %245 = vmatprep.subr.mxu0 0.0
    %246 = vmatpush1.msra.mxu0 0.0
    %247 = vmatprep.subr.mxu0 0.0
    %248 = vmatpush1.msra.mxu0 0.0
    %249 = vmatprep.subr.mxu0 0.0
    %250 = vmatpush1.msra.mxu0 0.0
    %251 = vmatprep.subr.mxu0 0.0
    %252 = vmatpush1.msra.mxu0 0.0
    %253 = vmatprep.mubr.f32.mxu0 0.0
    %254 = vmatmul.mubr.f32.gmra.mrb[0].mxu0 %v184
    %v255 = vpop.f32.mrb[0].mxu0
    %v256 = vadd.f32 0.0, %v255
    %v257 = vpop.f32.mrb[0].mxu0
    %258 = vmatprep.mubr.f32.mxu0 0.0
    %259 = vmatmul.mubr.f32.gmra.mrb[0].mxu0 %v187
    %v260 = vpop.f32.mrb[0].mxu0
    %v261 = vadd.f32 0.0, %v260
    %v262 = vpop.f32.mrb[0].mxu0
    %263 = vdwg.mxu0
    %v265 = vsel %vm95, %v169, 0
    %v268 = vsel %vm95, %v256, 0
    %270 = vmatprep.subr.mxu0 0.0
    %271 = vmatpush1.xpose.msra.mxu0 %v268
    %272 = vmatprep.subr.mxu0 0.0
    %273 = vmatpush1.xpose.msra.mxu0 0.0
    %274 = vmatprep.subr.mxu0 0.0
    %275 = vmatpush1.xpose.msra.mxu0 0.0
    %276 = vmatprep.subr.mxu0 0.0
    %277 = vmatpush1.xpose.msra.mxu0 0.0
    %278 = vmatprep.subr.mxu0 0.0
    %279 = vmatpush1.xpose.msra.mxu0 0.0
    %280 = vmatprep.subr.mxu0 0.0
    %281 = vmatpush1.xpose.msra.mxu0 0.0
    %282 = vmatprep.subr.mxu0 0.0
    %283 = vmatpush1.xpose.msra.mxu0 0.0
    %284 = vmatprep.subr.mxu0 0.0
    %285 = vmatpush1.xpose.msra.mxu0 0.0
    %286 = vmatprep.subr.mxu0 0.0
    %287 = vmatpush1.xpose.msra.mxu0 0.0
    %288 = vmatprep.subr.mxu0 0.0
    %289 = vmatpush1.xpose.msra.mxu0 0.0
    %290 = vmatprep.subr.mxu0 0.0
    %291 = vmatpush1.xpose.msra.mxu0 0.0
    %292 = vmatprep.subr.mxu0 0.0
    %293 = vmatpush1.xpose.msra.mxu0 0.0
    %294 = vmatprep.subr.mxu0 0.0
    %295 = vmatpush1.xpose.msra.mxu0 0.0
    %296 = vmatprep.subr.mxu0 0.0
    %297 = vmatpush1.xpose.msra.mxu0 0.0
    %298 = vmatprep.subr.mxu0 0.0
    %299 = vmatpush1.xpose.msra.mxu0 0.0
    %300 = vmatprep.subr.mxu0 0.0
    %301 = vmatpush1.xpose.msra.mxu0 0.0
    %302 = vmatprep.subr.mxu0 0.0
    %303 = vmatpush1.xpose.msra.mxu0 0.0
    %304 = vmatprep.subr.mxu0 0.0
    %305 = vmatpush1.xpose.msra.mxu0 0.0
    %306 = vmatprep.subr.mxu0 0.0
    %307 = vmatpush1.xpose.msra.mxu0 0.0
    %308 = vmatprep.subr.mxu0 0.0
    %309 = vmatpush1.xpose.msra.mxu0 0.0
    %310 = vmatprep.subr.mxu0 0.0
    %311 = vmatpush1.xpose.msra.mxu0 0.0
    %312 = vmatprep.subr.mxu0 0.0
    %313 = vmatpush1.xpose.msra.mxu0 0.0
    %314 = vmatprep.subr.mxu0 0.0
    %315 = vmatpush1.xpose.msra.mxu0 0.0
    %316 = vmatprep.subr.mxu0 0.0
    %317 = vmatpush1.xpose.msra.mxu0 0.0
    %318 = vmatprep.subr.mxu0 0.0
    %319 = vmatpush1.xpose.msra.mxu0 0.0
    %320 = vmatprep.subr.mxu0 0.0
    %321 = vmatpush1.xpose.msra.mxu0 0.0
    %322 = vmatprep.subr.mxu0 0.0
    %323 = vmatpush1.xpose.msra.mxu0 0.0
    %324 = vmatprep.subr.mxu0 0.0
    %325 = vmatpush1.xpose.msra.mxu0 0.0
    %326 = vmatprep.subr.mxu0 0.0
    %327 = vmatpush1.xpose.msra.mxu0 0.0
    %328 = vmatprep.subr.mxu0 0.0
    %329 = vmatpush1.xpose.msra.mxu0 0.0
    %330 = vmatprep.subr.mxu0 0.0
    %331 = vmatpush1.xpose.msra.mxu0 0.0
    %332 = vmatprep.subr.mxu0 0.0
    %333 = vmatpush1.xpose.msra.mxu0 0.0
    %334 = vmatprep.mubr.f32.mxu0 0.0
    %335 = vmatmul.mubr.f32.gmra.mrb[0].mxu0 %v265
    %v336 = vpop.f32.mrb[0].mxu0
    %v337 = vadd.f32 0.0, %v336
    %v338 = vpop.f32.mrb[0].mxu0
    %339 = vdwg.mxu0
    %v341 = vsel %vm95, %v174, 0
    %v344 = vsel %vm95, %v261, 0
    %346 = vmatprep.subr.mxu0 0.0
    %347 = vmatpush1.xpose.msra.mxu0 %v344
    %348 = vmatprep.subr.mxu0 0.0
    %349 = vmatpush1.xpose.msra.mxu0 0.0
    %350 = vmatprep.subr.mxu0 0.0
    %351 = vmatpush1.xpose.msra.mxu0 0.0
    %352 = vmatprep.subr.mxu0 0.0
    %353 = vmatpush1.xpose.msra.mxu0 0.0
    %354 = vmatprep.subr.mxu0 0.0
    %355 = vmatpush1.xpose.msra.mxu0 0.0
    %356 = vmatprep.subr.mxu0 0.0
    %357 = vmatpush1.xpose.msra.mxu0 0.0
    %358 = vmatprep.subr.mxu0 0.0
    %359 = vmatpush1.xpose.msra.mxu0 0.0
    %360 = vmatprep.subr.mxu0 0.0
    %361 = vmatpush1.xpose.msra.mxu0 0.0
    %362 = vmatprep.subr.mxu0 0.0
    %363 = vmatpush1.xpose.msra.mxu0 0.0
    %364 = vmatprep.subr.mxu0 0.0
    %365 = vmatpush1.xpose.msra.mxu0 0.0
    %366 = vmatprep.subr.mxu0 0.0
    %367 = vmatpush1.xpose.msra.mxu0 0.0
    %368 = vmatprep.subr.mxu0 0.0
    %369 = vmatpush1.xpose.msra.mxu0 0.0
    %370 = vmatprep.subr.mxu0 0.0
    %371 = vmatpush1.xpose.msra.mxu0 0.0
    %372 = vmatprep.subr.mxu0 0.0
    %373 = vmatpush1.xpose.msra.mxu0 0.0
    %374 = vmatprep.subr.mxu0 0.0
    %375 = vmatpush1.xpose.msra.mxu0 0.0
    %376 = vmatprep.subr.mxu0 0.0
    %377 = vmatpush1.xpose.msra.mxu0 0.0
    %378 = vmatprep.subr.mxu0 0.0
    %379 = vmatpush1.xpose.msra.mxu0 0.0
    %380 = vmatprep.subr.mxu0 0.0
    %381 = vmatpush1.xpose.msra.mxu0 0.0
    %382 = vmatprep.subr.mxu0 0.0
    %383 = vmatpush1.xpose.msra.mxu0 0.0
    %384 = vmatprep.subr.mxu0 0.0
    %385 = vmatpush1.xpose.msra.mxu0 0.0
    %386 = vmatprep.subr.mxu0 0.0
    %387 = vmatpush1.xpose.msra.mxu0 0.0
    %388 = vmatprep.subr.mxu0 0.0
    %389 = vmatpush1.xpose.msra.mxu0 0.0
    %390 = vmatprep.subr.mxu0 0.0
    %391 = vmatpush1.xpose.msra.mxu0 0.0
    %392 = vmatprep.subr.mxu0 0.0
    %393 = vmatpush1.xpose.msra.mxu0 0.0
    %394 = vmatprep.subr.mxu0 0.0
    %395 = vmatpush1.xpose.msra.mxu0 0.0
    %396 = vmatprep.subr.mxu0 0.0
    %397 = vmatpush1.xpose.msra.mxu0 0.0
    %398 = vmatprep.subr.mxu0 0.0
    %399 = vmatpush1.xpose.msra.mxu0 0.0
    %400 = vmatprep.subr.mxu0 0.0
    %401 = vmatpush1.xpose.msra.mxu0 0.0
    %402 = vmatprep.subr.mxu0 0.0
    %403 = vmatpush1.xpose.msra.mxu0 0.0
    %404 = vmatprep.subr.mxu0 0.0
    %405 = vmatpush1.xpose.msra.mxu0 0.0
    %406 = vmatprep.subr.mxu0 0.0
    %407 = vmatpush1.xpose.msra.mxu0 0.0
    %408 = vmatprep.subr.mxu0 0.0
    %409 = vmatpush1.xpose.msra.mxu0 0.0
    %410 = vmatprep.mubr.f32.mxu0 0.0
    %411 = vmatmul.mubr.f32.gmra.mrb[0].mxu0 %v341
    %v412 = vpop.f32.mrb[0].mxu0
    %v413 = vadd.f32 0.0, %v412
    %v414 = vpop.f32.mrb[0].mxu0
    %415 = vdwg.mxu0
    %vm416 = vcmask 64512
    %v417 = vsel %vm416, %v337, -inf
    %418 = vmax.xlane.f32.xlu0 %v417
    %v419 = vpop.xlane.xlu0 %418
    %v420 = vsel %vm416, %v413, -inf
    %421 = vmax.xlane.f32.xlu0 %v420
    %v422 = vpop.xlane.xlu0 %421
    %v423 = vsub.f32 %v337, %v419
    %v424 = vsub.f32 %v413, %v422
    %v425 = vmul.f32 %v423, 1.442695
    %v426 = vpow.pop %v425
    %v427 = vmul.f32 %v424, 1.442695
    %v428 = vpow.pop %v427
    %v429 = vsel %vm416, %v426, 0.0
    %430 = vadd.xlane.f32.xlu0 %v429
    %v431 = vpop.xlane.xlu0 %430
    %v432 = vsel %vm416, %v428, 0.0
    %433 = vadd.xlane.f32.xlu0 %v432
    %v434 = vpop.xlane.xlu0 %433
    %435 = vrot.lane.b32.xlu0 %v256, 96
    %v436 = vpop.permute.xlu0 %435
    %v439 = vsel %vm416, %v426, 0
    %441 = vmatprep.subr.mxu0 0.0
    %442 = vmatpush1.msra.mxu0 %v436
    %443 = vmatprep.subr.mxu0 0.0
    %444 = vmatpush1.msra.mxu0 0.0
    %445 = vmatprep.subr.mxu0 0.0
    %446 = vmatpush1.msra.mxu0 0.0
    %447 = vmatprep.subr.mxu0 0.0
    %448 = vmatpush1.msra.mxu0 0.0
    %449 = vmatprep.subr.mxu0 0.0
    %450 = vmatpush1.msra.mxu0 0.0
    %451 = vmatprep.subr.mxu0 0.0
    %452 = vmatpush1.msra.mxu0 0.0
    %453 = vmatprep.subr.mxu0 0.0
    %454 = vmatpush1.msra.mxu0 0.0
    %455 = vmatprep.subr.mxu0 0.0
    %456 = vmatpush1.msra.mxu0 0.0
    %457 = vmatprep.subr.mxu0 0.0
    %458 = vmatpush1.msra.mxu0 0.0
    %459 = vmatprep.subr.mxu0 0.0
    %460 = vmatpush1.msra.mxu0 0.0
    %461 = vmatprep.subr.mxu0 0.0
    %462 = vmatpush1.msra.mxu0 0.0
    %463 = vmatprep.subr.mxu0 0.0
    %464 = vmatpush1.msra.mxu0 0.0
    %465 = vmatprep.subr.mxu0 0.0
    %466 = vmatpush1.msra.mxu0 0.0
    %467 = vmatprep.subr.mxu0 0.0
    %468 = vmatpush1.msra.mxu0 0.0
    %469 = vmatprep.subr.mxu0 0.0
    %470 = vmatpush1.msra.mxu0 0.0
    %471 = vmatprep.subr.mxu0 0.0
    %472 = vmatpush1.msra.mxu0 0.0
    %473 = vmatprep.subr.mxu0 0.0
    %474 = vmatpush1.msra.mxu0 0.0
    %475 = vmatprep.subr.mxu0 0.0
    %476 = vmatpush1.msra.mxu0 0.0
    %477 = vmatprep.subr.mxu0 0.0
    %478 = vmatpush1.msra.mxu0 0.0
    %479 = vmatprep.subr.mxu0 0.0
    %480 = vmatpush1.msra.mxu0 0.0
    %481 = vmatprep.subr.mxu0 0.0
    %482 = vmatpush1.msra.mxu0 0.0
    %483 = vmatprep.subr.mxu0 0.0
    %484 = vmatpush1.msra.mxu0 0.0
    %485 = vmatprep.subr.mxu0 0.0
    %486 = vmatpush1.msra.mxu0 0.0
    %487 = vmatprep.subr.mxu0 0.0
    %488 = vmatpush1.msra.mxu0 0.0
    %489 = vmatprep.subr.mxu0 0.0
    %490 = vmatpush1.msra.mxu0 0.0
    %491 = vmatprep.subr.mxu0 0.0
    %492 = vmatpush1.msra.mxu0 0.0
    %493 = vmatprep.subr.mxu0 0.0
    %494 = vmatpush1.msra.mxu0 0.0
    %495 = vmatprep.subr.mxu0 0.0
    %496 = vmatpush1.msra.mxu0 0.0
    %497 = vmatprep.subr.mxu0 0.0
    %498 = vmatpush1.msra.mxu0 0.0
    %499 = vmatprep.subr.mxu0 0.0
    %500 = vmatpush1.msra.mxu0 0.0
    %501 = vmatprep.subr.mxu0 0.0
    %502 = vmatpush1.msra.mxu0 0.0
    %503 = vmatprep.subr.mxu0 0.0
    %504 = vmatpush1.msra.mxu0 0.0
    %505 = vmatprep.mubr.f32.mxu0 0.0
    %506 = vmatmul.mubr.f32.gmra.mrb[0].mxu0 %v439
    %v507 = vpop.f32.mrb[0].mxu0
    %v508 = vadd.f32 0.0, %v507
    %v509 = vpop.f32.mrb[0].mxu0
    %510 = vdwg.mxu0
    %511 = vrot.lane.b32.xlu0 %v261, 96
    %v512 = vpop.permute.xlu0 %511
    %v515 = vsel %vm416, %v428, 0
    %517 = vmatprep.subr.mxu0 0.0
    %518 = vmatpush1.msra.mxu0 %v512
    %519 = vmatprep.subr.mxu0 0.0
    %520 = vmatpush1.msra.mxu0 0.0
    %521 = vmatprep.subr.mxu0 0.0
    %522 = vmatpush1.msra.mxu0 0.0
    %523 = vmatprep.subr.mxu0 0.0
    %524 = vmatpush1.msra.mxu0 0.0
    %525 = vmatprep.subr.mxu0 0.0
    %526 = vmatpush1.msra.mxu0 0.0
    %527 = vmatprep.subr.mxu0 0.0
    %528 = vmatpush1.msra.mxu0 0.0
    %529 = vmatprep.subr.mxu0 0.0
    %530 = vmatpush1.msra.mxu0 0.0
    %531 = vmatprep.subr.mxu0 0.0
    %532 = vmatpush1.msra.mxu0 0.0
    %533 = vmatprep.subr.mxu0 0.0
    %534 = vmatpush1.msra.mxu0 0.0
    %535 = vmatprep.subr.mxu0 0.0
    %536 = vmatpush1.msra.mxu0 0.0
    %537 = vmatprep.subr.mxu0 0.0
    %538 = vmatpush1.msra.mxu0 0.0
    %539 = vmatprep.subr.mxu0 0.0
    %540 = vmatpush1.msra.mxu0 0.0
    %541 = vmatprep.subr.mxu0 0.0
    %542 = vmatpush1.msra.mxu0 0.0
    %543 = vmatprep.subr.mxu0 0.0
    %544 = vmatpush1.msra.mxu0 0.0
    %545 = vmatprep.subr.mxu0 0.0
    %546 = vmatpush1.msra.mxu0 0.0
    %547 = vmatprep.subr.mxu0 0.0
    %548 = vmatpush1.msra.mxu0 0.0
    %549 = vmatprep.subr.mxu0 0.0
    %550 = vmatpush1.msra.mxu0 0.0
    %551 = vmatprep.subr.mxu0 0.0
    %552 = vmatpush1.msra.mxu0 0.0
    %553 = vmatprep.subr.mxu0 0.0
    %554 = vmatpush1.msra.mxu0 0.0
    %555 = vmatprep.subr.mxu0 0.0
    %556 = vmatpush1.msra.mxu0 0.0
    %557 = vmatprep.subr.mxu0 0.0
    %558 = vmatpush1.msra.mxu0 0.0
    %559 = vmatprep.subr.mxu0 0.0
    %560 = vmatpush1.msra.mxu0 0.0
    %561 = vmatprep.subr.mxu0 0.0
    %562 = vmatpush1.msra.mxu0 0.0
    %563 = vmatprep.subr.mxu0 0.0
    %564 = vmatpush1.msra.mxu0 0.0
    %565 = vmatprep.subr.mxu0 0.0
    %566 = vmatpush1.msra.mxu0 0.0
    %567 = vmatprep.subr.mxu0 0.0
    %568 = vmatpush1.msra.mxu0 0.0
    %569 = vmatprep.subr.mxu0 0.0
    %570 = vmatpush1.msra.mxu0 0.0
    %571 = vmatprep.subr.mxu0 0.0
    %572 = vmatpush1.msra.mxu0 0.0
    %573 = vmatprep.subr.mxu0 0.0
    %574 = vmatpush1.msra.mxu0 0.0
    %575 = vmatprep.subr.mxu0 0.0
    %576 = vmatpush1.msra.mxu0 0.0
    %577 = vmatprep.subr.mxu0 0.0
    %578 = vmatpush1.msra.mxu0 0.0
    %579 = vmatprep.subr.mxu0 0.0
    %580 = vmatpush1.msra.mxu0 0.0
    %581 = vmatprep.mubr.f32.mxu0 0.0
    %582 = vmatmul.mubr.f32.gmra.mrb[0].mxu0 %v515
    %v583 = vpop.f32.mrb[0].mxu0
    %v584 = vadd.f32 0.0, %v583
    %v585 = vpop.f32.mrb[0].mxu0
    %586 = vdwg.mxu0
    %v587 = vrcp.pop %v431
    %v588 = vrcp.pop %v434
    %v589 = vmul.f32 %v508, %v587
    %v590 = vmul.f32 %v584, %v588
    %v591 = vld [vmem:[#allocation10] sm:$0xff]
    %v592 = vld [vmem:[#allocation10 + $0x8] sm:$0xff]
    %v593 = vld [vmem:[#allocation10 + $0x10] sm:$0xff]
    %v594 = vld [vmem:[#allocation10 + $0x18] sm:$0xff]
    %v596 = vsel %vm95, %v589, 0
    %v599 = vsel %vm95, %v590, 0
    %601 = vmatprep.subr.mxu0 0.0
    %602 = vmatpush1.msra.mxu0 %v591
    %603 = vmatprep.subr.mxu0 0.0
    %604 = vmatpush1.msra.mxu0 %v592
    %605 = vmatprep.subr.mxu0 0.0
    %606 = vmatpush1.msra.mxu0 %v593
    %607 = vmatprep.subr.mxu0 0.0
    %608 = vmatpush1.msra.mxu0 %v594
    %609 = vmatprep.subr.mxu0 0.0
    %610 = vmatpush1.msra.mxu0 0.0
    %611 = vmatprep.subr.mxu0 0.0
    %612 = vmatpush1.msra.mxu0 0.0
    %613 = vmatprep.subr.mxu0 0.0
    %614 = vmatpush1.msra.mxu0 0.0
    %615 = vmatprep.subr.mxu0 0.0
    %616 = vmatpush1.msra.mxu0 0.0
    %617 = vmatprep.subr.mxu0 0.0
    %618 = vmatpush1.msra.mxu0 0.0
    %619 = vmatprep.subr.mxu0 0.0
    %620 = vmatpush1.msra.mxu0 0.0
    %621 = vmatprep.subr.mxu0 0.0
    %622 = vmatpush1.msra.mxu0 0.0
    %623 = vmatprep.subr.mxu0 0.0
    %624 = vmatpush1.msra.mxu0 0.0
    %625 = vmatprep.subr.mxu0 0.0
    %626 = vmatpush1.msra.mxu0 0.0
    %627 = vmatprep.subr.mxu0 0.0
    %628 = vmatpush1.msra.mxu0 0.0
    %629 = vmatprep.subr.mxu0 0.0
    %630 = vmatpush1.msra.mxu0 0.0
    %631 = vmatprep.subr.mxu0 0.0
    %632 = vmatpush1.msra.mxu0 0.0
    %633 = vmatprep.subr.mxu0 0.0
    %634 = vmatpush1.msra.mxu0 0.0
    %635 = vmatprep.subr.mxu0 0.0
    %636 = vmatpush1.msra.mxu0 0.0
    %637 = vmatprep.subr.mxu0 0.0
    %638 = vmatpush1.msra.mxu0 0.0
    %639 = vmatprep.subr.mxu0 0.0
    %640 = vmatpush1.msra.mxu0 0.0
    %641 = vmatprep.subr.mxu0 0.0
    %642 = vmatpush1.msra.mxu0 0.0
    %643 = vmatprep.subr.mxu0 0.0
    %644 = vmatpush1.msra.mxu0 0.0
    %645 = vmatprep.subr.mxu0 0.0
    %646 = vmatpush1.msra.mxu0 0.0
    %647 = vmatprep.subr.mxu0 0.0
    %648 = vmatpush1.msra.mxu0 0.0
    %649 = vmatprep.subr.mxu0 0.0
    %650 = vmatpush1.msra.mxu0 0.0
    %651 = vmatprep.subr.mxu0 0.0
    %652 = vmatpush1.msra.mxu0 0.0
    %653 = vmatprep.subr.mxu0 0.0
    %654 = vmatpush1.msra.mxu0 0.0
    %655 = vmatprep.subr.mxu0 0.0
    %656 = vmatpush1.msra.mxu0 0.0
    %657 = vmatprep.subr.mxu0 0.0
    %658 = vmatpush1.msra.mxu0 0.0
    %659 = vmatprep.subr.mxu0 0.0
    %660 = vmatpush1.msra.mxu0 0.0
    %661 = vmatprep.subr.mxu0 0.0
    %662 = vmatpush1.msra.mxu0 0.0
    %663 = vmatprep.subr.mxu0 0.0
    %664 = vmatpush1.msra.mxu0 0.0
    %665 = vmatprep.mubr.f32.mxu0 0.0
    %666 = vmatmul.mubr.f32.gmra.mrb[0].mxu0 %v596
    %v667 = vpop.f32.mrb[0].mxu0
    %v668 = vadd.f32 0.0, %v667
    %v669 = vpop.f32.mrb[0].mxu0
    %670 = vmatprep.mubr.f32.mxu0 0.0
    %671 = vmatmul.mubr.f32.gmra.mrb[0].mxu0 %v599
    %v672 = vpop.f32.mrb[0].mxu0
    %v673 = vadd.f32 0.0, %v672
    %v674 = vpop.f32.mrb[0].mxu0
    %675 = vdwg.mxu0
    %676 = vst [vmem:[#allocation11] sm:$0xff] %v668
    %677 = vst [vmem:[#allocation11 + $0x8] sm:$0xff] %v673
    // Predicated region
    $region42: #{tpu_custom_call.1} parent=1 // pred_check
      _
    $region43: #{tpu_custom_call.1} parent=1 // pred_check_branch
      %679 = sbr.rel (0) target = $region45
    $region44: #{tpu_custom_call.1} parent=1 // pred_region
      %s681 = ssub.s32 256, 256
      %682 = vsyncadd [#allocation4], %s681
      %s683 = sshll.u32 [#allocation11], 4
      %s684 = int_to_ptr.vmem [resolvable:$true] %s683
      %689 = dma.vmem_to_hbm [thread:$0]  %s684, 256, %s5, [#allocation4], 128, 128, 8
    $region45: #{tpu_custom_call.1} parent=1 // pred_fallthru
      _
    // Predicated region
    $region46: #{tpu_custom_call.1} parent=1 // pred_check
      _
    $region47: #{tpu_custom_call.1} parent=1 // pred_check_branch
      %691 = sbr.rel (0) target = $region49
    $region48: #{tpu_custom_call.1} parent=1 // pred_region
      %692 = dma.done [#allocation4], 256
    $region49: #{tpu_custom_call.1} parent=1 // pred_fallthru
      _
    %693 = vsyncpa [#allocation3], 1
    %694 = vsyncpa [#allocation6], 1
    %695 = vsyncpa [#allocation9], 1
    %696 = vsyncpa [#allocation4], 1

</llo_original>
